<compile_context>
chip_gen: v7x
topology: tpu7x:2x2x1
jax: 0.10.0
libtpu: 0.0.40
codegen_flags: <defaults>
</compile_context>

<pallas_src>
import jax
import jax.numpy as jnp
from jax.experimental import pallas as pl
from jax.experimental.pallas import tpu as pltpu

IN_FEATURES = 3
OUT_FEATURES = 32
PACK = 32                                # logical rows packed per slab row
K_PACKED = PACK * IN_FEATURES            # 96 packed input features
OUT_LANES = PACK * OUT_FEATURES          # 1024 packed output lanes
MAX_ROW_TILE = 1024                      # slab rows per grid step (cap)


def linear_relu_kernel(x_ref, w_ref, b_ref, o_ref):
    # x_ref: (R, 96)    32 logical input rows x 3 features per slab row
    # w_ref: (96, 1024) block-diagonal packed weights (32 copies of (3, 32))
    # b_ref: (1, 1024)  bias tiled 32x along lanes
    # o_ref: (R, 1024)  lane-dense output (32 logical rows per slab row)
    acc = jnp.dot(x_ref[...], w_ref[...], preferred_element_type=jnp.float32)
    acc = acc + b_ref[...]
    o_ref[...] = jnp.maximum(acc, 0.0).astype(o_ref.dtype)


def pack_params(w_t, b):
    """Pack (in, out) weight and (out,) bias once, outside the call path."""
    w_packed = jnp.kron(jnp.eye(PACK, dtype=w_t.dtype), w_t)        # (96, 1024)
    b_packed = jnp.tile(b.reshape(1, OUT_FEATURES), (1, PACK))      # (1, 1024)
    return w_packed, b_packed


def linear_relu(x, w_packed, b_packed):
    """x: (..., IN_FEATURES) -> ReLU(x @ W^T + b), shape (..., OUT_FEATURES)."""
    lead_shape = x.shape[:-1]
    m = 1
    for d in lead_shape:
        m *= d
    dtype = x.dtype

    # Pad rows so the packed slab is sublane-aligned (8 slab rows = 256 rows).
    row_quantum = 8 * PACK
    m_pad = ((m + row_quantum - 1) // row_quantum) * row_quantum
    m_slab = m_pad // PACK

    # Row-tile selection: single tile at small M; at large M force an even
    # number of grid steps so ("parallel",) shards across both v7x TCs.
    if m_slab <= MAX_ROW_TILE:
        row_tile = m_slab
    else:
        steps = pl.cdiv(m_slab, MAX_ROW_TILE)
        if steps % 2:
            steps += 1
        row_tile = ((pl.cdiv(m_slab, steps) + 7) // 8) * 8
    m_slab_pad = pl.cdiv(m_slab, row_tile) * row_tile
    m_pad = m_slab_pad * PACK

    x2d = x.reshape(m, IN_FEATURES)
    if m_pad != m:
        x2d = jnp.pad(x2d, ((0, m_pad - m), (0, 0)))
    x_slab = x2d.reshape(m_slab_pad, K_PACKED)

    cost = pl.CostEstimate(
        flops=2 * m_pad * IN_FEATURES * OUT_FEATURES,
        transcendentals=0,
        bytes_accessed=4 * (x_slab.size + w_packed.size + b_packed.size
                            + m_slab_pad * OUT_LANES),
    )

    out_slab = pl.pallas_call(
        linear_relu_kernel,
        out_shape=jax.ShapeDtypeStruct((m_slab_pad, OUT_LANES), dtype),
        grid=(m_slab_pad // row_tile,),
        in_specs=[
            pl.BlockSpec((row_tile, K_PACKED), lambda i: (i, 0)),
            pl.BlockSpec((K_PACKED, OUT_LANES), lambda i: (0, 0)),
            pl.BlockSpec((1, OUT_LANES), lambda i: (0, 0)),
        ],
        out_specs=pl.BlockSpec((row_tile, OUT_LANES), lambda i: (i, 0)),
        compiler_params=pltpu.CompilerParams(
            dimension_semantics=("parallel",)),
        cost_estimate=cost,
    )(x_slab, w_packed, b_packed)

    out2d = out_slab.reshape(m_pad, OUT_FEATURES)
    if m_pad != m:
        out2d = out2d[:m, :]
    return out2d.reshape(*lead_shape, OUT_FEATURES)


def init_params(key):
    # Deterministic init mimicking nn.Linear default: U(-1/sqrt(fan_in), +)
    kw, kb = jax.random.split(key)
    bound = 1.0 / jnp.sqrt(jnp.float32(IN_FEATURES))
    # torch stores weight as (out, in); we keep the transposed (in, out) layout.
    w_t = jax.random.uniform(
        kw, (IN_FEATURES, OUT_FEATURES), jnp.float32, -bound, bound
    )
    b = jax.random.uniform(kb, (OUT_FEATURES,), jnp.float32, -bound, bound)
    return w_t, b


if __name__ == "__main__":
    key = jax.random.PRNGKey(0)
    k_x, k_p = jax.random.split(key)

    # Small features-last input consistent with Linear(3, 32): (B, H, W, 3)
    x = jax.random.normal(k_x, (2, 5, 5, IN_FEATURES), jnp.float32)
    w_t, b = init_params(k_p)
    w_packed, b_packed = pack_params(w_t, b)   # packed once, not per call

    y = linear_relu(x, w_packed, b_packed)
    y = jax.block_until_ready(y)

    # Reference check in plain JAX.
    y_ref = jnp.maximum(jnp.einsum("bhwk,kn->bhwn", x, w_t) + b, 0.0)
    assert y.shape == (2, 5, 5, OUT_FEATURES)
    assert jnp.allclose(y, y_ref, atol=1e-5, rtol=1e-5)

    print("KERNEL_OK")
</pallas_src>

<mosaic_0001>
module attributes {stable_mosaic.version = 11 : i64} {
  func.func @linear_relu_kernel(%arg0: i32, %arg1: memref<8x96xf32, #tpu.memory_space<vmem>>, %arg2: memref<96x1024xf32, #tpu.memory_space<vmem>>, %arg3: memref<1x1024xf32, #tpu.memory_space<vmem>>, %arg4: memref<8x1024xf32, #tpu.memory_space<vmem>>) attributes {dimension_semantics = [#tpu.dimension_semantics<parallel>], iteration_bounds = array<i64: 1>, scalar_prefetch = 0 : i64, scratch_operands = 0 : i64, tpu.core_type = #tpu.core_type<tc>, window_params = [{transform_indices = @transform_0, window_bounds = array<i64: 8, 96>}, {pipeline_mode = #tpu.pipeline_mode<synchronous>, transform_indices = @transform_1, window_bounds = array<i64: 96, 1024>}, {pipeline_mode = #tpu.pipeline_mode<synchronous>, transform_indices = @transform_2, window_bounds = array<i64: 1, 1024>}, {transform_indices = @transform_3, window_bounds = array<i64: 8, 1024>}]} {
    %c0 = arith.constant 0 : index
    %c0_0 = arith.constant 0 : index
    %0 = vector.load %arg1[%c0, %c0_0] : memref<8x96xf32, #tpu.memory_space<vmem>>, vector<8x96xf32>
    %c0_1 = arith.constant 0 : index
    %c0_2 = arith.constant 0 : index
    %1 = vector.load %arg2[%c0_1, %c0_2] : memref<96x1024xf32, #tpu.memory_space<vmem>>, vector<96x1024xf32>
    %cst = arith.constant dense<0.000000e+00> : vector<8x1024xf32>
    %2 = tpu.matmul %0, %1, %cst {dimension_numbers = #tpu.dot_dimension_numbers<[1], [0], [0], [1], [0, 0, 1, 1], [], []>} : vector<8x96xf32>, vector<96x1024xf32>, vector<8x1024xf32> -> vector<8x1024xf32>
    %c0_3 = arith.constant 0 : index
    %c0_4 = arith.constant 0 : index
    %3 = vector.load %arg3[%c0_3, %c0_4] : memref<1x1024xf32, #tpu.memory_space<vmem>>, vector<1x1024xf32>
    %4 = vector.broadcast %3 : vector<1x1024xf32> to vector<8x1024xf32>
    %5 = arith.addf %2, %4 : vector<8x1024xf32>
    %cst_5 = arith.constant 0.000000e+00 : f32
    %6 = vector.broadcast %cst_5 : f32 to vector<8x1024xf32>
    %7 = arith.maximumf %5, %6 : vector<8x1024xf32>
    %c0_6 = arith.constant 0 : index
    %c0_7 = arith.constant 0 : index
    %8 = vector.load %arg4[%c0_6, %c0_7] : memref<8x1024xf32, #tpu.memory_space<vmem>>, vector<8x1024xf32>
    tpu.vector_store %arg4[%c0_6, %c0_7], %7 {strides = array<i32>} : memref<8x1024xf32, #tpu.memory_space<vmem>>, vector<8x1024xf32>,
    return
  }
  func.func @transform_0(%arg0: i32) -> (i32, i32) {
    %c0_i32 = arith.constant 0 : i32
    %c0_i32_0 = arith.constant 0 : i32
    return %arg0, %c0_i32 : i32, i32
  }
  func.func @transform_1(%arg0: i32) -> (i32, i32) {
    %c0_i32 = arith.constant 0 : i32
    %c0_i32_0 = arith.constant 0 : i32
    %c0_i32_1 = arith.constant 0 : i32
    return %c0_i32, %c0_i32_0 : i32, i32
  }
  func.func @transform_2(%arg0: i32) -> (i32, i32) {
    %c0_i32 = arith.constant 0 : i32
    %c0_i32_0 = arith.constant 0 : i32
    %c0_i32_1 = arith.constant 0 : i32
    return %c0_i32, %c0_i32_0 : i32, i32
  }
  func.func @transform_3(%arg0: i32) -> (i32, i32) {
    %c0_i32 = arith.constant 0 : i32
    %c0_i32_0 = arith.constant 0 : i32
    return %arg0, %c0_i32 : i32, i32
  }
}

</mosaic_0001>

<llo_original>
// kernel: tpu_custom_call.1
$region0: #{tpu_custom_call.1}
  #allocation0 [shape = 'u32[]', space=smem, size = 0x4, offset = 0x4, fixed_abs, tag = 'smem constant byte address 0x4 - core index']
  #allocation1 [shape = 'u32[144,128]{1,0:T(1,128)}', space=vmem, size = 0x12000, scoped, tag = 'internal scratch']
  %s0 = inlined_call_operand.hbm [shape: f32[8,96], index: 0, kind: input, shape index: {}]
  %s1 = inlined_call_operand.hbm [shape: f32[96,1024], index: 1, kind: input, shape index: {}]
  %s2 = inlined_call_operand.hbm [shape: f32[1,1024], index: 2, kind: input, shape index: {}]
  %s3 = inlined_call_operand.hbm [shape: f32[8,1024], index: 3, kind: output, shape index: {}]
  %s4 = sld [smem:[#allocation0]]
  $region34: #{tpu_custom_call.1} parent=0
    _
  %s6 = ssub.s32 1, %s4
  %s7 = scalar_select 0, %s6, %s4
  $region1: #{tpu_custom_call.1} parent=0
    #allocation2 [shape = 'u8[4096]{0}', space=vmem, size = 0x1000, scoped, tag = 'input window, operand 0, single buffered']
    #allocation3 [shape = 's32[1]{0}', space=sflag, size = 0x4, scoped, tag = 'scoped memory for tpu_custom_call.1']
    #allocation4 [shape = 's32[1]{0}', space=sflag, size = 0x4, scoped, tag = 'scoped memory for tpu_custom_call.1']
    #allocation5 [shape = 'u8[393216]{0}', space=vmem, size = 0x60000, scoped, tag = 'input window, operand 1, single buffered']
    #allocation6 [shape = 's32[1]{0}', space=sflag, size = 0x4, scoped, tag = 'scoped memory for tpu_custom_call.1']
    #allocation7 [shape = 'u8[4096]{0}', space=vmem, size = 0x1000, scoped, tag = 'input window, operand 2, single buffered']
    #allocation8 [shape = 'u8[32768]{0}', space=vmem, size = 0x8000, scoped, tag = 'output window, operand 0, single buffered']
    %8 = vsyncpa [#allocation3], 0
    %9 = vsyncpa [#allocation6], 0
    %10 = vsyncpa [#allocation4], 0
    // Predicated region
    $region2: #{tpu_custom_call.1} parent=1 // pred_check
      _
    $region3: #{tpu_custom_call.1} parent=1 // pred_check_branch
      %12 = sbr.rel (0) target = $region5
    $region4: #{tpu_custom_call.1} parent=1 // pred_region
      %s14 = ssub.s32 128, 128
      %15 = vsyncadd [#allocation3], %s14
      %s17 = sshll.u32 [#allocation2], 4
      %s18 = int_to_ptr.vmem [resolvable:$true] %s17
      %20 = dma.hbm_to_vmem [thread:$0]  %s0, 128, %s18, [#allocation3]
    $region5: #{tpu_custom_call.1} parent=1 // pred_fallthru
      _
    // Predicated region
    $region6: #{tpu_custom_call.1} parent=1 // pred_check
      _
    $region7: #{tpu_custom_call.1} parent=1 // pred_check_branch
      %22 = sbr.rel (0) target = $region9
    $region8: #{tpu_custom_call.1} parent=1 // pred_region
      %s24 = ssub.s32 12288, 12288
      %25 = vsyncadd [#allocation6], %s24
      %s26 = sshll.u32 [#allocation5], 4
      %s27 = int_to_ptr.vmem [resolvable:$true] %s26
      %32 = dma.hbm_to_vmem [thread:$0]  %s1, 12288, %s27, [#allocation6], 1024, 1024, 64
    $region9: #{tpu_custom_call.1} parent=1 // pred_fallthru
      _
    // Predicated region
    $region10: #{tpu_custom_call.1} parent=1 // pred_check
      _
    $region11: #{tpu_custom_call.1} parent=1 // pred_check_branch
      %34 = sbr.rel (0) target = $region13
    $region12: #{tpu_custom_call.1} parent=1 // pred_region
      %s36 = ssub.s32 128, 128
      %37 = vsyncadd [#allocation6], %s36
      %s39 = sshll.u32 [#allocation7], 4
      %s40 = int_to_ptr.vmem [resolvable:$true] %s39
      %42 = dma.hbm_to_vmem [thread:$0]  %s2, 128, %s40, [#allocation6]
    $region13: #{tpu_custom_call.1} parent=1 // pred_fallthru
      _
    // Predicated region
    $region14: #{tpu_custom_call.1} parent=1 // pred_check
      _
    $region15: #{tpu_custom_call.1} parent=1 // pred_check_branch
      %44 = sbr.rel (0) target = $region17
    $region16: #{tpu_custom_call.1} parent=1 // pred_region
      %45 = dma.done [#allocation3], 128
    $region17: #{tpu_custom_call.1} parent=1 // pred_fallthru
      _
    // Predicated region
    $region18: #{tpu_custom_call.1} parent=1 // pred_check
      _
    $region19: #{tpu_custom_call.1} parent=1 // pred_check_branch
      %47 = sbr.rel (0) target = $region21
    $region20: #{tpu_custom_call.1} parent=1 // pred_region
      %48 = dma.done [#allocation6], 12288
    $region21: #{tpu_custom_call.1} parent=1 // pred_fallthru
      _
    // Predicated region
    $region22: #{tpu_custom_call.1} parent=1 // pred_check
      _
    $region23: #{tpu_custom_call.1} parent=1 // pred_check_branch
      %50 = sbr.rel (0) target = $region25
    $region24: #{tpu_custom_call.1} parent=1 // pred_region
      %51 = dma.done [#allocation6], 128
    $region25: #{tpu_custom_call.1} parent=1 // pred_fallthru
      _
    %v52 = vld [vmem:[#allocation2] sm:$0xff]
    %v53 = vld [vmem:[#allocation5] sm:$0xff]
    %v54 = vld [vmem:[#allocation5 + $0x8] sm:$0xff]
    %v55 = vld [vmem:[#allocation5 + $0x10] sm:$0xff]
    %v56 = vld [vmem:[#allocation5 + $0x18] sm:$0xff]
    %v57 = vld [vmem:[#allocation5 + $0x20] sm:$0xff]
    %v58 = vld [vmem:[#allocation5 + $0x28] sm:$0xff]
    %v59 = vld [vmem:[#allocation5 + $0x30] sm:$0xff]
    %v60 = vld [vmem:[#allocation5 + $0x38] sm:$0xff]
    %v61 = vld [vmem:[#allocation5 + $0x40] sm:$0xff]
    %v62 = vld [vmem:[#allocation5 + $0x48] sm:$0xff]
    %v63 = vld [vmem:[#allocation5 + $0x50] sm:$0xff]
    %v64 = vld [vmem:[#allocation5 + $0x58] sm:$0xff]
    %v65 = vld [vmem:[#allocation5 + $0x60] sm:$0xff]
    %v66 = vld [vmem:[#allocation5 + $0x68] sm:$0xff]
    %v67 = vld [vmem:[#allocation5 + $0x70] sm:$0xff]
    %v68 = vld [vmem:[#allocation5 + $0x78] sm:$0xff]
    %v69 = vld [vmem:[#allocation5 + $0x80] sm:$0xff]
    %v70 = vld [vmem:[#allocation5 + $0x88] sm:$0xff]
    %v71 = vld [vmem:[#allocation5 + $0x90] sm:$0xff]
    %v72 = vld [vmem:[#allocation5 + $0x98] sm:$0xff]
    %v73 = vld [vmem:[#allocation5 + $0xa0] sm:$0xff]
    %v74 = vld [vmem:[#allocation5 + $0xa8] sm:$0xff]
    %v75 = vld [vmem:[#allocation5 + $0xb0] sm:$0xff]
    %v76 = vld [vmem:[#allocation5 + $0xb8] sm:$0xff]
    %v77 = vld [vmem:[#allocation5 + $0xc0] sm:$0xff]
    %v78 = vld [vmem:[#allocation5 + $0xc8] sm:$0xff]
    %v79 = vld [vmem:[#allocation5 + $0xd0] sm:$0xff]
    %v80 = vld [vmem:[#allocation5 + $0xd8] sm:$0xff]
    %v81 = vld [vmem:[#allocation5 + $0xe0] sm:$0xff]
    %v82 = vld [vmem:[#allocation5 + $0xe8] sm:$0xff]
    %v83 = vld [vmem:[#allocation5 + $0xf0] sm:$0xff]
    %v84 = vld [vmem:[#allocation5 + $0xf8] sm:$0xff]
    %v85 = vld [vmem:[#allocation5 + $0x100] sm:$0xff]
    %v86 = vld [vmem:[#allocation5 + $0x108] sm:$0xff]
    %v87 = vld [vmem:[#allocation5 + $0x110] sm:$0xff]
    %v88 = vld [vmem:[#allocation5 + $0x118] sm:$0xff]
    %v89 = vld [vmem:[#allocation5 + $0x120] sm:$0xff]
    %v90 = vld [vmem:[#allocation5 + $0x128] sm:$0xff]
    %v91 = vld [vmem:[#allocation5 + $0x130] sm:$0xff]
    %v92 = vld [vmem:[#allocation5 + $0x138] sm:$0xff]
    %v93 = vld [vmem:[#allocation5 + $0x140] sm:$0xff]
    %v94 = vld [vmem:[#allocation5 + $0x148] sm:$0xff]
    %v95 = vld [vmem:[#allocation5 + $0x150] sm:$0xff]
    %v96 = vld [vmem:[#allocation5 + $0x158] sm:$0xff]
    %v97 = vld [vmem:[#allocation5 + $0x160] sm:$0xff]
    %v98 = vld [vmem:[#allocation5 + $0x168] sm:$0xff]
    %v99 = vld [vmem:[#allocation5 + $0x170] sm:$0xff]
    %v100 = vld [vmem:[#allocation5 + $0x178] sm:$0xff]
    %v101 = vld [vmem:[#allocation5 + $0x180] sm:$0xff]
    %v102 = vld [vmem:[#allocation5 + $0x188] sm:$0xff]
    %v103 = vld [vmem:[#allocation5 + $0x190] sm:$0xff]
    %v104 = vld [vmem:[#allocation5 + $0x198] sm:$0xff]
    %v105 = vld [vmem:[#allocation5 + $0x1a0] sm:$0xff]
    %v106 = vld [vmem:[#allocation5 + $0x1a8] sm:$0xff]
    %v107 = vld [vmem:[#allocation5 + $0x1b0] sm:$0xff]
    %v108 = vld [vmem:[#allocation5 + $0x1b8] sm:$0xff]
    %v109 = vld [vmem:[#allocation5 + $0x1c0] sm:$0xff]
    %v110 = vld [vmem:[#allocation5 + $0x1c8] sm:$0xff]
    %v111 = vld [vmem:[#allocation5 + $0x1d0] sm:$0xff]
    %v112 = vld [vmem:[#allocation5 + $0x1d8] sm:$0xff]
    %v113 = vld [vmem:[#allocation5 + $0x1e0] sm:$0xff]
    %v114 = vld [vmem:[#allocation5 + $0x1e8] sm:$0xff]
    %v115 = vld [vmem:[#allocation5 + $0x1f0] sm:$0xff]
    %v116 = vld [vmem:[#allocation5 + $0x1f8] sm:$0xff]
    %v117 = vld [vmem:[#allocation5 + $0x200] sm:$0xff]
    %v118 = vld [vmem:[#allocation5 + $0x208] sm:$0xff]
    %v119 = vld [vmem:[#allocation5 + $0x210] sm:$0xff]
    %v120 = vld [vmem:[#allocation5 + $0x218] sm:$0xff]
    %v121 = vld [vmem:[#allocation5 + $0x220] sm:$0xff]
    %v122 = vld [vmem:[#allocation5 + $0x228] sm:$0xff]
    %v123 = vld [vmem:[#allocation5 + $0x230] sm:$0xff]
    %v124 = vld [vmem:[#allocation5 + $0x238] sm:$0xff]
    %v125 = vld [vmem:[#allocation5 + $0x240] sm:$0xff]
    %v126 = vld [vmem:[#allocation5 + $0x248] sm:$0xff]
    %v127 = vld [vmem:[#allocation5 + $0x250] sm:$0xff]
    %v128 = vld [vmem:[#allocation5 + $0x258] sm:$0xff]
    %v129 = vld [vmem:[#allocation5 + $0x260] sm:$0xff]
    %v130 = vld [vmem:[#allocation5 + $0x268] sm:$0xff]
    %v131 = vld [vmem:[#allocation5 + $0x270] sm:$0xff]
    %v132 = vld [vmem:[#allocation5 + $0x278] sm:$0xff]
    %v133 = vld [vmem:[#allocation5 + $0x280] sm:$0xff]
    %v134 = vld [vmem:[#allocation5 + $0x288] sm:$0xff]
    %v135 = vld [vmem:[#allocation5 + $0x290] sm:$0xff]
    %v136 = vld [vmem:[#allocation5 + $0x298] sm:$0xff]
    %v137 = vld [vmem:[#allocation5 + $0x2a0] sm:$0xff]
    %v138 = vld [vmem:[#allocation5 + $0x2a8] sm:$0xff]
    %v139 = vld [vmem:[#allocation5 + $0x2b0] sm:$0xff]
    %v140 = vld [vmem:[#allocation5 + $0x2b8] sm:$0xff]
    %v141 = vld [vmem:[#allocation5 + $0x2c0] sm:$0xff]
    %v142 = vld [vmem:[#allocation5 + $0x2c8] sm:$0xff]
    %v143 = vld [vmem:[#allocation5 + $0x2d0] sm:$0xff]
    %v144 = vld [vmem:[#allocation5 + $0x2d8] sm:$0xff]
    %v145 = vld [vmem:[#allocation5 + $0x2e0] sm:$0xff]
    %v146 = vld [vmem:[#allocation5 + $0x2e8] sm:$0xff]
    %v147 = vld [vmem:[#allocation5 + $0x2f0] sm:$0xff]
    %v148 = vld [vmem:[#allocation5 + $0x2f8] sm:$0xff]
    %v149 = vld [vmem:[#allocation7] sm:$0xff]
    %v151 = vlaneseq
    %v152 = vshrl.u32 %v151, 7
    %v153 = vsub.s32 0, %v152
    %v154 = vrot.slane %v149, %v153
    %v155 = vlaneseq
    %v156 = vshrl.u32 %v155, 7
    %v157 = vsub.s32 1, %v156
    %v158 = vrot.slane %v149, %v157
    %v159 = vlaneseq
    %v160 = vshrl.u32 %v159, 7
    %v161 = vsub.s32 2, %v160
    %v162 = vrot.slane %v149, %v161
    %v163 = vlaneseq
    %v164 = vshrl.u32 %v163, 7
    %v165 = vsub.s32 3, %v164
    %v166 = vrot.slane %v149, %v165
    %v167 = vlaneseq
    %v168 = vshrl.u32 %v167, 7
    %v169 = vsub.s32 4, %v168
    %v170 = vrot.slane %v149, %v169
    %v171 = vlaneseq
    %v172 = vshrl.u32 %v171, 7
    %v173 = vsub.s32 5, %v172
    %v174 = vrot.slane %v149, %v173
    %v175 = vlaneseq
    %v176 = vshrl.u32 %v175, 7
    %v177 = vsub.s32 6, %v176
    %v178 = vrot.slane %v149, %v177
    %v179 = vlaneseq
    %v180 = vshrl.u32 %v179, 7
    %v181 = vsub.s32 7, %v180
    %v182 = vrot.slane %v149, %v181
    %vm191 = vcmask 785408
    %v193 = vsel %vm191, %v52, 0
    %195 = vmatprep.subr.mxu0 %v54
    %196 = vmatpush1.msra.mxu0 %v53
    %197 = vmatprep.subr.mxu0 %v62
    %198 = vmatpush1.msra.mxu0 %v61
    %199 = vmatprep.subr.mxu0 %v70
    %200 = vmatpush1.msra.mxu0 %v69
    %201 = vmatprep.subr.mxu0 %v78
    %202 = vmatpush1.msra.mxu0 %v77
    %203 = vmatprep.subr.mxu0 %v86
    %204 = vmatpush1.msra.mxu0 %v85
    %205 = vmatprep.subr.mxu0 %v94
    %206 = vmatpush1.msra.mxu0 %v93
    %207 = vmatprep.subr.mxu0 %v102
    %208 = vmatpush1.msra.mxu0 %v101
    %209 = vmatprep.subr.mxu0 %v110
    %210 = vmatpush1.msra.mxu0 %v109
    %211 = vmatprep.subr.mxu0 %v118
    %212 = vmatpush1.msra.mxu0 %v117
    %213 = vmatprep.subr.mxu0 %v126
    %214 = vmatpush1.msra.mxu0 %v125
    %215 = vmatprep.subr.mxu0 %v134
    %216 = vmatpush1.msra.mxu0 %v133
    %217 = vmatprep.subr.mxu0 %v142
    %218 = vmatpush1.msra.mxu0 %v141
    %219 = vmatprep.subr.mxu0 0.0
    %220 = vmatpush1.msra.mxu0 0.0
    %221 = vmatprep.subr.mxu0 0.0
    %222 = vmatpush1.msra.mxu0 0.0
    %223 = vmatprep.subr.mxu0 0.0
    %224 = vmatpush1.msra.mxu0 0.0
    %225 = vmatprep.subr.mxu0 0.0
    %226 = vmatpush1.msra.mxu0 0.0
    %227 = vmatprep.subr.mxu0 0.0
    %228 = vmatpush1.msra.mxu0 0.0
    %229 = vmatprep.subr.mxu0 0.0
    %230 = vmatpush1.msra.mxu0 0.0
    %231 = vmatprep.subr.mxu0 0.0
    %232 = vmatpush1.msra.mxu0 0.0
    %233 = vmatprep.subr.mxu0 0.0
    %234 = vmatpush1.msra.mxu0 0.0
    %235 = vmatprep.subr.mxu0 0.0
    %236 = vmatpush1.msra.mxu0 0.0
    %237 = vmatprep.subr.mxu0 0.0
    %238 = vmatpush1.msra.mxu0 0.0
    %239 = vmatprep.subr.mxu0 0.0
    %240 = vmatpush1.msra.mxu0 0.0
    %241 = vmatprep.subr.mxu0 0.0
    %242 = vmatpush1.msra.mxu0 0.0
    %243 = vmatprep.subr.mxu0 0.0
    %244 = vmatpush1.msra.mxu0 0.0
    %245 = vmatprep.subr.mxu0 0.0
    %246 = vmatpush1.msra.mxu0 0.0
    %247 = vmatprep.subr.mxu0 0.0
    %248 = vmatpush1.msra.mxu0 0.0
    %249 = vmatprep.subr.mxu0 0.0
    %250 = vmatpush1.msra.mxu0 0.0
    %251 = vmatprep.subr.mxu0 0.0
    %252 = vmatpush1.msra.mxu0 0.0
    %253 = vmatprep.subr.mxu0 0.0
    %254 = vmatpush1.msra.mxu0 0.0
    %255 = vmatprep.subr.mxu0 0.0
    %256 = vmatpush1.msra.mxu0 0.0
    %257 = vmatprep.subr.mxu0 0.0
    %258 = vmatpush1.msra.mxu0 0.0
    %259 = vmatprep.mubr.f32.mxu0 0.0
    %260 = vmatmul.mubr.f32.gmra.mrb[0].mxu0 %v193
    %v261 = vpop.f32.mrb[0].mxu0
    %v262 = vadd.f32 %v154, %v261
    %v263 = vpop.f32.mrb[0].mxu0
    %v264 = vadd.f32 %v158, %v263
    %265 = vdwg.mxu0
    %266 = vmatprep.subr.mxu0 %v56
    %267 = vmatpush1.msra.mxu0 %v55
    %268 = vmatprep.subr.mxu0 %v64
    %269 = vmatpush1.msra.mxu0 %v63
    %270 = vmatprep.subr.mxu0 %v72
    %271 = vmatpush1.msra.mxu0 %v71
    %272 = vmatprep.subr.mxu0 %v80
    %273 = vmatpush1.msra.mxu0 %v79
    %274 = vmatprep.subr.mxu0 %v88
    %275 = vmatpush1.msra.mxu0 %v87
    %276 = vmatprep.subr.mxu0 %v96
    %277 = vmatpush1.msra.mxu0 %v95
    %278 = vmatprep.subr.mxu0 %v104
    %279 = vmatpush1.msra.mxu0 %v103
    %280 = vmatprep.subr.mxu0 %v112
    %281 = vmatpush1.msra.mxu0 %v111
    %282 = vmatprep.subr.mxu0 %v120
    %283 = vmatpush1.msra.mxu0 %v119
    %284 = vmatprep.subr.mxu0 %v128
    %285 = vmatpush1.msra.mxu0 %v127
    %286 = vmatprep.subr.mxu0 %v136
    %287 = vmatpush1.msra.mxu0 %v135
    %288 = vmatprep.subr.mxu0 %v144
    %289 = vmatpush1.msra.mxu0 %v143
    %290 = vmatprep.subr.mxu0 0.0
    %291 = vmatpush1.msra.mxu0 0.0
    %292 = vmatprep.subr.mxu0 0.0
    %293 = vmatpush1.msra.mxu0 0.0
    %294 = vmatprep.subr.mxu0 0.0
    %295 = vmatpush1.msra.mxu0 0.0
    %296 = vmatprep.subr.mxu0 0.0
    %297 = vmatpush1.msra.mxu0 0.0
    %298 = vmatprep.subr.mxu0 0.0
    %299 = vmatpush1.msra.mxu0 0.0
    %300 = vmatprep.subr.mxu0 0.0
    %301 = vmatpush1.msra.mxu0 0.0
    %302 = vmatprep.subr.mxu0 0.0
    %303 = vmatpush1.msra.mxu0 0.0
    %304 = vmatprep.subr.mxu0 0.0
    %305 = vmatpush1.msra.mxu0 0.0
    %306 = vmatprep.subr.mxu0 0.0
    %307 = vmatpush1.msra.mxu0 0.0
    %308 = vmatprep.subr.mxu0 0.0
    %309 = vmatpush1.msra.mxu0 0.0
    %310 = vmatprep.subr.mxu0 0.0
    %311 = vmatpush1.msra.mxu0 0.0
    %312 = vmatprep.subr.mxu0 0.0
    %313 = vmatpush1.msra.mxu0 0.0
    %314 = vmatprep.subr.mxu0 0.0
    %315 = vmatpush1.msra.mxu0 0.0
    %316 = vmatprep.subr.mxu0 0.0
    %317 = vmatpush1.msra.mxu0 0.0
    %318 = vmatprep.subr.mxu0 0.0
    %319 = vmatpush1.msra.mxu0 0.0
    %320 = vmatprep.subr.mxu0 0.0
    %321 = vmatpush1.msra.mxu0 0.0
    %322 = vmatprep.subr.mxu0 0.0
    %323 = vmatpush1.msra.mxu0 0.0
    %324 = vmatprep.subr.mxu0 0.0
    %325 = vmatpush1.msra.mxu0 0.0
    %326 = vmatprep.subr.mxu0 0.0
    %327 = vmatpush1.msra.mxu0 0.0
    %328 = vmatprep.subr.mxu0 0.0
    %329 = vmatpush1.msra.mxu0 0.0
    %330 = vmatprep.mubr.f32.mxu0 0.0
    %331 = vmatmul.mubr.f32.gmra.mrb[0].mxu0 %v193
    %v332 = vpop.f32.mrb[0].mxu0
    %v333 = vadd.f32 %v162, %v332
    %v334 = vpop.f32.mrb[0].mxu0
    %v335 = vadd.f32 %v166, %v334
    %336 = vdwg.mxu0
    %337 = vmatprep.subr.mxu0 %v58
    %338 = vmatpush1.msra.mxu0 %v57
    %339 = vmatprep.subr.mxu0 %v66
    %340 = vmatpush1.msra.mxu0 %v65
    %341 = vmatprep.subr.mxu0 %v74
    %342 = vmatpush1.msra.mxu0 %v73
    %343 = vmatprep.subr.mxu0 %v82
    %344 = vmatpush1.msra.mxu0 %v81
    %345 = vmatprep.subr.mxu0 %v90
    %346 = vmatpush1.msra.mxu0 %v89
    %347 = vmatprep.subr.mxu0 %v98
    %348 = vmatpush1.msra.mxu0 %v97
    %349 = vmatprep.subr.mxu0 %v106
    %350 = vmatpush1.msra.mxu0 %v105
    %351 = vmatprep.subr.mxu0 %v114
    %352 = vmatpush1.msra.mxu0 %v113
    %353 = vmatprep.subr.mxu0 %v122
    %354 = vmatpush1.msra.mxu0 %v121
    %355 = vmatprep.subr.mxu0 %v130
    %356 = vmatpush1.msra.mxu0 %v129
    %357 = vmatprep.subr.mxu0 %v138
    %358 = vmatpush1.msra.mxu0 %v137
    %359 = vmatprep.subr.mxu0 %v146
    %360 = vmatpush1.msra.mxu0 %v145
    %361 = vmatprep.subr.mxu0 0.0
    %362 = vmatpush1.msra.mxu0 0.0
    %363 = vmatprep.subr.mxu0 0.0
    %364 = vmatpush1.msra.mxu0 0.0
    %365 = vmatprep.subr.mxu0 0.0
    %366 = vmatpush1.msra.mxu0 0.0
    %367 = vmatprep.subr.mxu0 0.0
    %368 = vmatpush1.msra.mxu0 0.0
    %369 = vmatprep.subr.mxu0 0.0
    %370 = vmatpush1.msra.mxu0 0.0
    %371 = vmatprep.subr.mxu0 0.0
    %372 = vmatpush1.msra.mxu0 0.0
    %373 = vmatprep.subr.mxu0 0.0
    %374 = vmatpush1.msra.mxu0 0.0
    %375 = vmatprep.subr.mxu0 0.0
    %376 = vmatpush1.msra.mxu0 0.0
    %377 = vmatprep.subr.mxu0 0.0
    %378 = vmatpush1.msra.mxu0 0.0
    %379 = vmatprep.subr.mxu0 0.0
    %380 = vmatpush1.msra.mxu0 0.0
    %381 = vmatprep.subr.mxu0 0.0
    %382 = vmatpush1.msra.mxu0 0.0
    %383 = vmatprep.subr.mxu0 0.0
    %384 = vmatpush1.msra.mxu0 0.0
    %385 = vmatprep.subr.mxu0 0.0
    %386 = vmatpush1.msra.mxu0 0.0
    %387 = vmatprep.subr.mxu0 0.0
    %388 = vmatpush1.msra.mxu0 0.0
    %389 = vmatprep.subr.mxu0 0.0
    %390 = vmatpush1.msra.mxu0 0.0
    %391 = vmatprep.subr.mxu0 0.0
    %392 = vmatpush1.msra.mxu0 0.0
    %393 = vmatprep.subr.mxu0 0.0
    %394 = vmatpush1.msra.mxu0 0.0
    %395 = vmatprep.subr.mxu0 0.0
    %396 = vmatpush1.msra.mxu0 0.0
    %397 = vmatprep.subr.mxu0 0.0
    %398 = vmatpush1.msra.mxu0 0.0
    %399 = vmatprep.subr.mxu0 0.0
    %400 = vmatpush1.msra.mxu0 0.0
    %401 = vmatprep.mubr.f32.mxu0 0.0
    %402 = vmatmul.mubr.f32.gmra.mrb[0].mxu0 %v193
    %v403 = vpop.f32.mrb[0].mxu0
    %v404 = vadd.f32 %v170, %v403
    %v405 = vpop.f32.mrb[0].mxu0
    %v406 = vadd.f32 %v174, %v405
    %407 = vdwg.mxu0
    %408 = vmatprep.subr.mxu0 %v60
    %409 = vmatpush1.msra.mxu0 %v59
    %410 = vmatprep.subr.mxu0 %v68
    %411 = vmatpush1.msra.mxu0 %v67
    %412 = vmatprep.subr.mxu0 %v76
    %413 = vmatpush1.msra.mxu0 %v75
    %414 = vmatprep.subr.mxu0 %v84
    %415 = vmatpush1.msra.mxu0 %v83
    %416 = vmatprep.subr.mxu0 %v92
    %417 = vmatpush1.msra.mxu0 %v91
    %418 = vmatprep.subr.mxu0 %v100
    %419 = vmatpush1.msra.mxu0 %v99
    %420 = vmatprep.subr.mxu0 %v108
    %421 = vmatpush1.msra.mxu0 %v107
    %422 = vmatprep.subr.mxu0 %v116
    %423 = vmatpush1.msra.mxu0 %v115
    %424 = vmatprep.subr.mxu0 %v124
    %425 = vmatpush1.msra.mxu0 %v123
    %426 = vmatprep.subr.mxu0 %v132
    %427 = vmatpush1.msra.mxu0 %v131
    %428 = vmatprep.subr.mxu0 %v140
    %429 = vmatpush1.msra.mxu0 %v139
    %430 = vmatprep.subr.mxu0 %v148
    %431 = vmatpush1.msra.mxu0 %v147
    %432 = vmatprep.subr.mxu0 0.0
    %433 = vmatpush1.msra.mxu0 0.0
    %434 = vmatprep.subr.mxu0 0.0
    %435 = vmatpush1.msra.mxu0 0.0
    %436 = vmatprep.subr.mxu0 0.0
    %437 = vmatpush1.msra.mxu0 0.0
    %438 = vmatprep.subr.mxu0 0.0
    %439 = vmatpush1.msra.mxu0 0.0
    %440 = vmatprep.subr.mxu0 0.0
    %441 = vmatpush1.msra.mxu0 0.0
    %442 = vmatprep.subr.mxu0 0.0
    %443 = vmatpush1.msra.mxu0 0.0
    %444 = vmatprep.subr.mxu0 0.0
    %445 = vmatpush1.msra.mxu0 0.0
    %446 = vmatprep.subr.mxu0 0.0
    %447 = vmatpush1.msra.mxu0 0.0
    %448 = vmatprep.subr.mxu0 0.0
    %449 = vmatpush1.msra.mxu0 0.0
    %450 = vmatprep.subr.mxu0 0.0
    %451 = vmatpush1.msra.mxu0 0.0
    %452 = vmatprep.subr.mxu0 0.0
    %453 = vmatpush1.msra.mxu0 0.0
    %454 = vmatprep.subr.mxu0 0.0
    %455 = vmatpush1.msra.mxu0 0.0
    %456 = vmatprep.subr.mxu0 0.0
    %457 = vmatpush1.msra.mxu0 0.0
    %458 = vmatprep.subr.mxu0 0.0
    %459 = vmatpush1.msra.mxu0 0.0
    %460 = vmatprep.subr.mxu0 0.0
    %461 = vmatpush1.msra.mxu0 0.0
    %462 = vmatprep.subr.mxu0 0.0
    %463 = vmatpush1.msra.mxu0 0.0
    %464 = vmatprep.subr.mxu0 0.0
    %465 = vmatpush1.msra.mxu0 0.0
    %466 = vmatprep.subr.mxu0 0.0
    %467 = vmatpush1.msra.mxu0 0.0
    %468 = vmatprep.subr.mxu0 0.0
    %469 = vmatpush1.msra.mxu0 0.0
    %470 = vmatprep.subr.mxu0 0.0
    %471 = vmatpush1.msra.mxu0 0.0
    %472 = vmatprep.mubr.f32.mxu0 0.0
    %473 = vmatmul.mubr.f32.gmra.mrb[0].mxu0 %v193
    %v474 = vpop.f32.mrb[0].mxu0
    %v475 = vadd.f32 %v178, %v474
    %v476 = vpop.f32.mrb[0].mxu0
    %v477 = vadd.f32 %v182, %v476
    %478 = vdwg.mxu0
    %v479 = vmax.f32 %v262, 0.0
    %v480 = vmax.f32 %v264, 0.0
    %v481 = vmax.f32 %v333, 0.0
    %v482 = vmax.f32 %v335, 0.0
    %v483 = vmax.f32 %v404, 0.0
    %v484 = vmax.f32 %v406, 0.0
    %v485 = vmax.f32 %v475, 0.0
    %v486 = vmax.f32 %v477, 0.0
    %487 = vst [vmem:[#allocation8] sm:$0xff] %v479
    %488 = vst [vmem:[#allocation8 + $0x8] sm:$0xff] %v480
    %489 = vst [vmem:[#allocation8 + $0x10] sm:$0xff] %v481
    %490 = vst [vmem:[#allocation8 + $0x18] sm:$0xff] %v482
    %491 = vst [vmem:[#allocation8 + $0x20] sm:$0xff] %v483
    %492 = vst [vmem:[#allocation8 + $0x28] sm:$0xff] %v484
    %493 = vst [vmem:[#allocation8 + $0x30] sm:$0xff] %v485
    %494 = vst [vmem:[#allocation8 + $0x38] sm:$0xff] %v486
    // Predicated region
    $region26: #{tpu_custom_call.1} parent=1 // pred_check
      _
    $region27: #{tpu_custom_call.1} parent=1 // pred_check_branch
      %496 = sbr.rel (0) target = $region29
    $region28: #{tpu_custom_call.1} parent=1 // pred_region
      %s498 = ssub.s32 1024, 1024
      %499 = vsyncadd [#allocation4], %s498
      %s501 = sshll.u32 [#allocation8], 4
      %s502 = int_to_ptr.vmem [resolvable:$true] %s501
      %504 = dma.vmem_to_hbm [thread:$0]  %s502, 1024, %s3, [#allocation4]
    $region29: #{tpu_custom_call.1} parent=1 // pred_fallthru
      _
    // Predicated region
    $region30: #{tpu_custom_call.1} parent=1 // pred_check
      _
    $region31: #{tpu_custom_call.1} parent=1 // pred_check_branch
      %506 = sbr.rel (0) target = $region33
    $region32: #{tpu_custom_call.1} parent=1 // pred_region
      %507 = dma.done [#allocation4], 1024
    $region33: #{tpu_custom_call.1} parent=1 // pred_fallthru
      _
    %508 = vsyncpa [#allocation3], 1
    %509 = vsyncpa [#allocation6], 1
    %510 = vsyncpa [#allocation4], 1

</llo_original>
